<compile_context>
chip_gen: v5e
topology: v5e:2x2
jax: 0.10.0
libtpu: 0.0.40
codegen_flags: <defaults>
</compile_context>

<pallas_src>
import functools

import jax
import jax.numpy as jnp
from jax.experimental import pallas as pl
from jax.experimental.pallas import tpu as pltpu

_LANES = 128
_MAX_TILE_ROWS = 2048  # (2048, 128) f32 = 1 MiB per block (multiple of 8/16/32)


def _round_up(x: int, m: int) -> int:
    return ((x + m - 1) // m) * m


def _sublane_multiple(dtype) -> int:
    """Minimum sublane multiple so packed dtypes tile cleanly: 8 * (4 / itemsize)."""
    itemsize = jnp.dtype(dtype).itemsize
    return max(8, 8 * (4 // max(1, itemsize)))


def _scale_kernel(x_ref, o_ref, *, mean: float, stddev: float):
    # mean / stddev are compile-time constants (closed over via partial).
    # Upcast to f32 in-vreg (free on a mem-bound kernel; required on v5e for
    # bf16 inputs), FMA, then cast to the output dtype.
    x = x_ref[...].astype(jnp.float32)
    o_ref[...] = (x * stddev + mean).astype(o_ref.dtype)


@functools.partial(jax.jit, static_argnames=("mean", "stddev", "out_dtype"))
def _scale_values_2d(x2d: jax.Array, *, mean: float, stddev: float, out_dtype):
    """x2d: [rows, 128] (any dtype) -> [rows, 128] out_dtype, y = x*stddev+mean."""
    rows, lanes = x2d.shape
    # Largest tile that (a) is sublane-aligned for both input and output dtypes,
    # (b) stays ~1 MiB f32 so double-buffered in+out fits default scoped VMEM.
    align = max(_sublane_multiple(x2d.dtype), _sublane_multiple(out_dtype))
    tile_rows = min(_MAX_TILE_ROWS, _round_up(rows, align))
    grid = (pl.cdiv(rows, tile_rows),)  # ragged last block is masked by Pallas
    kernel = functools.partial(_scale_kernel, mean=mean, stddev=stddev)
    return pl.pallas_call(
        kernel,
        out_shape=jax.ShapeDtypeStruct((rows, lanes), out_dtype),
        grid=grid,
        in_specs=[pl.BlockSpec((tile_rows, lanes), lambda i: (i, 0))],
        out_specs=pl.BlockSpec((tile_rows, lanes), lambda i: (i, 0)),
        compiler_params=pltpu.CompilerParams(
            dimension_semantics=("parallel",)  # let both v7x TCs stream blocks
        ),
    )(x2d)


class ScaleValues:
    """JAX/Pallas port of modelforge ScaleValues."""

    def __init__(self, mean: float, stddev: float, property: str,
                 output_name: str) -> None:
        # Buffers kept for API parity with the torch module (shape [1], f32).
        self.mean = jnp.array([mean], dtype=jnp.float32)
        self.stddev = jnp.array([stddev], dtype=jnp.float32)
        self.property = property
        self.output_name = output_name
        # Compile-time constants baked into the kernel.
        self._mean = float(mean)
        self._stddev = float(stddev)

    def __call__(self, data):
        x = data[self.property]
        orig_shape = x.shape
        # torch promotion: x * float32_buffer + float32_buffer
        out_dtype = jnp.result_type(x.dtype, jnp.float32)

        flat = jnp.ravel(x)  # contiguous reshape (free), keeps original dtype
        n = flat.shape[0]

        if n == 0:
            y = (flat.astype(out_dtype) * self._stddev + self._mean).reshape(orig_shape)
            data[self.output_name] = y
            return data

        rem = n % _LANES
        if rem == 0:
            # Zero-copy lane-dense view: no pad, no trailing slice.
            x2d = flat.reshape(n // _LANES, _LANES)
            y2d = _scale_values_2d(x2d, mean=self._mean, stddev=self._stddev,
                                   out_dtype=out_dtype)
            y = y2d.reshape(orig_shape)
        else:
            # Minimal pad to the lane width (128) so the slab stays lane-dense;
            # only this fallback path pays the extra pad/slice passes.
            pad = _LANES - rem
            x2d = jnp.pad(flat, (0, pad)).reshape((n + pad) // _LANES, _LANES)
            y2d = _scale_values_2d(x2d, mean=self._mean, stddev=self._stddev,
                                   out_dtype=out_dtype)
            y = y2d.reshape(-1)[:n].reshape(orig_shape)

        data[self.output_name] = y
        return data


if __name__ == "__main__":
    key = jax.random.PRNGKey(0)
    k1, k2, k3 = jax.random.split(key, 3)

    module = ScaleValues(
        mean=-0.5, stddev=2.25,
        property="per_atom_energy", output_name="per_atom_energy_scaled",
    )

    # Case 1: n not a multiple of 128 (ragged / pad fallback path), f32 [n_atoms, 1].
    x1 = jax.random.normal(k1, (200, 1), dtype=jnp.float32)
    out1 = module({"per_atom_energy": x1})
    y1 = jax.block_until_ready(out1["per_atom_energy_scaled"])
    ref1 = x1 * 2.25 + (-0.5)
    assert y1.shape == x1.shape and y1.dtype == jnp.float32
    assert jnp.allclose(y1, ref1, rtol=1e-6, atol=1e-6)

    # Case 2: n a multiple of 128 (zero-copy lane-dense path), f32 1-D input.
    x2 = jax.random.normal(k2, (1024,), dtype=jnp.float32)
    out2 = module({"per_atom_energy": x2})
    y2 = jax.block_until_ready(out2["per_atom_energy_scaled"])
    ref2 = x2 * 2.25 + (-0.5)
    assert y2.shape == x2.shape
    assert jnp.allclose(y2, ref2, rtol=1e-6, atol=1e-6)

    # Case 3: bf16 input (16-bit HBM reads), output promoted to f32 like torch.
    x3 = jax.random.normal(k3, (512, 1), dtype=jnp.bfloat16)
    out3 = module({"per_atom_energy": x3})
    y3 = jax.block_until_ready(out3["per_atom_energy_scaled"])
    ref3 = x3.astype(jnp.float32) * 2.25 + (-0.5)
    assert y3.shape == x3.shape and y3.dtype == jnp.float32
    assert jnp.allclose(y3, ref3, rtol=1e-6, atol=1e-6)

    print("KERNEL_OK")
</pallas_src>

<mosaic_0001>
module attributes {stable_mosaic.version = 11 : i64} {
  func.func @_scale_kernel(%arg0: i32, %arg1: memref<8x128xf32, #tpu.memory_space<vmem>>, %arg2: memref<8x128xf32, #tpu.memory_space<vmem>>) attributes {dimension_semantics = [#tpu.dimension_semantics<parallel>], iteration_bounds = array<i64: 1>, scalar_prefetch = 0 : i64, scratch_operands = 0 : i64, tpu.core_type = #tpu.core_type<tc>, window_params = [{transform_indices = @transform_0, window_bounds = array<i64: 8, 128>}, {transform_indices = @transform_1, window_bounds = array<i64: 8, 128>}]} {
    %c0 = arith.constant 0 : index
    %c0_0 = arith.constant 0 : index
    %0 = vector.load %arg1[%c0, %c0_0] : memref<8x128xf32, #tpu.memory_space<vmem>>, vector<8x128xf32>
    %cst = arith.constant 2.250000e+00 : f32
    %1 = vector.broadcast %cst : f32 to vector<8x128xf32>
    %2 = arith.mulf %0, %1 : vector<8x128xf32>
    %cst_1 = arith.constant -5.000000e-01 : f32
    %3 = vector.broadcast %cst_1 : f32 to vector<8x128xf32>
    %4 = arith.addf %2, %3 : vector<8x128xf32>
    %c0_2 = arith.constant 0 : index
    %c0_3 = arith.constant 0 : index
    %5 = vector.load %arg2[%c0_2, %c0_3] : memref<8x128xf32, #tpu.memory_space<vmem>>, vector<8x128xf32>
    tpu.vector_store %arg2[%c0_2, %c0_3], %4 {strides = array<i32>} : memref<8x128xf32, #tpu.memory_space<vmem>>, vector<8x128xf32>,
    return
  }
  func.func @transform_0(%arg0: i32) -> (i32, i32) {
    %c0_i32 = arith.constant 0 : i32
    %c0_i32_0 = arith.constant 0 : i32
    return %arg0, %c0_i32 : i32, i32
  }
  func.func @transform_1(%arg0: i32) -> (i32, i32) {
    %c0_i32 = arith.constant 0 : i32
    %c0_i32_0 = arith.constant 0 : i32
    return %arg0, %c0_i32 : i32, i32
  }
}

</mosaic_0001>

<llo_original>
// kernel: _scale_values_2d.1
$region0: #{_scale_values_2d.1}
  #allocation0 [shape = 'u32[]', space=smem, size = 0x4, offset = 0x4, fixed_abs, tag = 'smem constant byte address 0x4 - core index']
  #allocation1 [shape = 'u32[72,128]{1,0:T(1,128)}', space=vmem, size = 0x9000, scoped, tag = 'internal scratch']
  %s0 = inlined_call_operand.hbm [shape: f32[2,128], index: 0, kind: input, shape index: {}]
  %s1 = inlined_call_operand.hbm [shape: f32[2,128], index: 1, kind: output, shape index: {}]
  %s2 = sld [smem:[#allocation0]]
  $region18: #{_scale_values_2d.1} parent=0
    _
  %s4 = ssub.s32 1, %s2
  %s5 = scalar_select 0, %s4, %s2
  $region1: #{_scale_values_2d.1} parent=0
    #allocation2 [shape = 'u8[4096]{0}', space=vmem, size = 0x1000, scoped, tag = 'input window, operand 0, single buffered']
    #allocation3 [shape = 's32[1]{0}', space=sflag, size = 0x4, scoped, tag = 'scoped memory for _scale_values_2d.1']
    #allocation4 [shape = 's32[1]{0}', space=sflag, size = 0x4, scoped, tag = 'scoped memory for _scale_values_2d.1']
    #allocation5 [shape = 'u8[4096]{0}', space=vmem, size = 0x1000, scoped, tag = 'output window, operand 0, single buffered']
    %6 = vsyncpa [#allocation3], 0
    %7 = vsyncpa [#allocation4], 0
    // Predicated region
    $region2: #{_scale_values_2d.1} parent=1 // pred_check
      _
    $region3: #{_scale_values_2d.1} parent=1 // pred_check_branch
      %9 = sbr.rel (0) target = $region5
    $region4: #{_scale_values_2d.1} parent=1 // pred_region
      %11 = vsyncadd [#allocation3], 96
      %s12 = sshll.u32 %s0, 4
      %s13 = int_to_ptr.hbm [resolvable:$true] %s12
      %s14 = sshll.u32 [#allocation2], 4
      %s15 = int_to_ptr.vmem [resolvable:$true] %s14
      %20 = dma.hbm_to_vmem [thread:$0]  %s13, 32, %s15, [#allocation3], 32, 32, 2
    $region5: #{_scale_values_2d.1} parent=1 // pred_fallthru
      _
    // Predicated region
    $region6: #{_scale_values_2d.1} parent=1 // pred_check
      _
    $region7: #{_scale_values_2d.1} parent=1 // pred_check_branch
      %22 = sbr.rel (0) target = $region9
    $region8: #{_scale_values_2d.1} parent=1 // pred_region
      %24 = dma.done [#allocation3], 128
    $region9: #{_scale_values_2d.1} parent=1 // pred_fallthru
      _
    %v25 = vld [vmem:[#allocation2] sm:$0xff]
    %v26 = vmul.f32 %v25, 2.25
    %v27 = vadd.f32 %v26, -0.5
    %28 = vst [vmem:[#allocation5] sm:$0xff] %v27
    // Predicated region
    $region10: #{_scale_values_2d.1} parent=1 // pred_check
      _
    $region11: #{_scale_values_2d.1} parent=1 // pred_check_branch
      %30 = sbr.rel (0) target = $region13
    $region12: #{_scale_values_2d.1} parent=1 // pred_region
      %32 = vsyncadd [#allocation4], 96
      %s33 = sshll.u32 [#allocation5], 4
      %s34 = int_to_ptr.vmem [resolvable:$true] %s33
      %s35 = sshll.u32 %s1, 4
      %s36 = int_to_ptr.hbm [resolvable:$true] %s35
      %41 = dma.vmem_to_hbm [thread:$0]  %s34, 32, %s36, [#allocation4], 32, 32, 2
    $region13: #{_scale_values_2d.1} parent=1 // pred_fallthru
      _
    // Predicated region
    $region14: #{_scale_values_2d.1} parent=1 // pred_check
      _
    $region15: #{_scale_values_2d.1} parent=1 // pred_check_branch
      %43 = sbr.rel (0) target = $region17
    $region16: #{_scale_values_2d.1} parent=1 // pred_region
      %45 = dma.done [#allocation4], 128
    $region17: #{_scale_values_2d.1} parent=1 // pred_fallthru
      _
    %46 = vsyncpa [#allocation3], 1
    %47 = vsyncpa [#allocation4], 1

</llo_original>
